<compile_context>
chip_gen: v6e
topology: v6e:2x2x1
jax: 0.10.0
libtpu: 0.0.40
codegen_flags: <defaults>
</compile_context>

<pallas_src>
import jax
import jax.numpy as jnp
from jax.experimental import pallas as pl
from jax.experimental.pallas import tpu as pltpu

BN_EPS = 1e-5


def _round_up(n, m):
    return ((n + m - 1) // m) * m


def _vmem_budget_bytes():
    """Per-generation scoped-VMEM budget: ~48 MiB on 64-MiB-VMEM chips (v7x),
    ~96 MiB on 128-MiB chips (v5e / v6e).  Conservative fallback if the query
    is unavailable."""
    try:
        cap = int(pltpu.get_tpu_info().vmem_capacity_bytes)
    except Exception:
        cap = 64 * 1024 * 1024
    if cap >= 128 * 1024 * 1024:
        return 96 * 1024 * 1024
    return 48 * 1024 * 1024


def _choose_tiles(R, HW, itemsize, vmem_limit):
    """Dtype- and byte-budget-aware tile sizes.

    Row unit keeps the sublane extent at/above the packed minimum tile
    (8 for f32, 16 for bf16, 32 for int8/fp8).  The spatial tile targets a
    fixed per-tile byte budget so 2x double-buffered tiles stay well under the
    scoped VMEM limit on every generation.  Row tile is capped so that there
    are >= 2 row blocks whenever possible (megacore sharding on v7x).
    """
    row_unit = 8 * max(1, 4 // max(1, itemsize))
    tr = min(512, _round_up(R, row_unit))
    if R > row_unit and pl.cdiv(R, tr) < 2:
        tr = _round_up(pl.cdiv(R, 2), row_unit)

    tile_budget = min(16 * 1024 * 1024, vmem_limit // 6)
    ts = (tile_budget // max(1, tr * itemsize)) // 128 * 128
    ts = max(128, min(ts, _round_up(HW, 128)))
    return tr, ts


# ---------------------------------------------------------------------------
# Pass 1: tiled spatial partial sums.  x viewed as (R, HW), R = B*C.
# Output: (n_s, R, 1) f32, one independent block per grid step (both axes
# "parallel"); the tiny cross-chunk reduction happens afterwards in XLA.
# ---------------------------------------------------------------------------
def _make_pool_kernel(ts, HW, ragged_spatial):
    def kernel(x_ref, out_ref):
        x = x_ref[...].astype(jnp.float32)
        if ragged_spatial:
            # Mask the spatial tail of the last block (padding is undefined).
            col = jax.lax.broadcasted_iota(jnp.int32, x.shape, 1)
            col = col + pl.program_id(1) * ts
            x = jnp.where(col < HW, x, 0.0)
        out_ref[...] = jnp.sum(x, axis=-1, keepdims=True)[None]

    return kernel


def _pool_partial_sums(x2, tr, ts, vmem_limit):
    R, HW = x2.shape
    nr, ns = pl.cdiv(R, tr), pl.cdiv(HW, ts)
    itemsize = jnp.dtype(x2.dtype).itemsize
    kernel = _make_pool_kernel(ts, HW, HW % ts != 0)
    return pl.pallas_call(
        kernel,
        out_shape=jax.ShapeDtypeStruct((ns, R, 1), jnp.float32),
        grid_spec=pltpu.PrefetchScalarGridSpec(
            num_scalar_prefetch=0,
            grid=(nr, ns),
            in_specs=[pl.BlockSpec((tr, ts), lambda r, s: (r, s))],
            out_specs=pl.BlockSpec((1, tr, 1), lambda r, s: (s, r, 0)),
        ),
        compiler_params=pltpu.CompilerParams(
            dimension_semantics=("parallel", "parallel"),
            vmem_limit_bytes=vmem_limit,
        ),
        cost_estimate=pl.CostEstimate(
            flops=R * HW,
            transcendentals=0,
            bytes_accessed=R * HW * itemsize + ns * R * 4,
        ),
    )(x2)


# ---------------------------------------------------------------------------
# Pass 2: tiled, lane-dense broadcast of the per-channel gate over HW.
# ---------------------------------------------------------------------------
def _bcast_kernel(g_ref, out_ref):
    # g_ref: (tr, 1) in the output dtype, channels on the sublane axis.
    # Lane-splat across the spatial axis -> full-width unmasked stores.
    out_ref[...] = jnp.broadcast_to(g_ref[...], out_ref.shape)


def _broadcast_gate(gate_col, HW, tr, ts, vmem_limit):
    R = gate_col.shape[0]
    itemsize = jnp.dtype(gate_col.dtype).itemsize
    return pl.pallas_call(
        _bcast_kernel,
        out_shape=jax.ShapeDtypeStruct((R, HW), gate_col.dtype),
        grid_spec=pltpu.PrefetchScalarGridSpec(
            num_scalar_prefetch=0,
            grid=(pl.cdiv(R, tr), pl.cdiv(HW, ts)),
            in_specs=[pl.BlockSpec((tr, 1), lambda r, s: (r, 0))],
            out_specs=pl.BlockSpec((tr, ts), lambda r, s: (r, s)),
        ),
        compiler_params=pltpu.CompilerParams(
            dimension_semantics=("parallel", "parallel"),
            vmem_limit_bytes=vmem_limit,
        ),
        cost_estimate=pl.CostEstimate(
            flops=0,
            transcendentals=0,
            bytes_accessed=R * HW * itemsize + R * itemsize,
        ),
    )(gate_col)


# ---------------------------------------------------------------------------
# Parameters (PyTorch-equivalent shapes) and host-side BN folding.
# ---------------------------------------------------------------------------
def _torch_linear_init(key, out_f, in_f):
    """PyTorch-default-style Linear init: U(-1/sqrt(in), 1/sqrt(in))."""
    kw, kb = jax.random.split(key)
    bound = 1.0 / jnp.sqrt(jnp.float32(in_f))
    w = jax.random.uniform(kw, (out_f, in_f), jnp.float32, -bound, bound)
    b = jax.random.uniform(kb, (out_f,), jnp.float32, -bound, bound)
    return w, b


def make_channel_attention_params(key, channel, reduction=16, num_layers=3):
    gate = [channel] + [channel // reduction] * num_layers + [channel]
    keys = jax.random.split(key, len(gate) - 1)
    params = {}
    for i in range(len(gate) - 2):
        w, b = _torch_linear_init(keys[i], gate[i + 1], gate[i])
        params[f"fc{i}_w"] = w                     # (out, in) like nn.Linear.weight
        params[f"fc{i}_b"] = b
        hid = gate[i + 1]
        # BN params stacked as rows: [gamma, beta, running_mean, running_var]
        params[f"bn{i}"] = jnp.stack([
            jnp.ones((hid,), jnp.float32),
            jnp.zeros((hid,), jnp.float32),
            jnp.zeros((hid,), jnp.float32),
            jnp.ones((hid,), jnp.float32),
        ], axis=0)
    w, b = _torch_linear_init(keys[-1], gate[-1], gate[-2])
    params["last_w"] = w
    params["last_b"] = b
    return params


def _fold_bn(w, b, bn):
    """Fold eval-mode BatchNorm1d into the preceding Linear (w: (out, in))."""
    gamma, beta, mean, var = bn[0], bn[1], bn[2], bn[3]
    scale = gamma / jnp.sqrt(var + BN_EPS)
    return w * scale[:, None], (b - mean) * scale + beta


# ---------------------------------------------------------------------------
# Top-level wrapper.
# ---------------------------------------------------------------------------
def channel_attention(x, params, *, expand=True):
    """x: (B, C, H, W) NCHW, like PyTorch.  Returns (B, C, H, W)."""
    B, C, H, W = x.shape
    R, HW = B * C, H * W
    itemsize = jnp.dtype(x.dtype).itemsize
    vmem_limit = _vmem_budget_bytes()
    tr, ts = _choose_tiles(R, HW, itemsize, vmem_limit)

    # Pass 1: per-(B,C) spatial partial sums, finished with a tiny XLA sum.
    x2 = x.reshape(R, HW)                                    # contiguous -> free
    partials = _pool_partial_sums(x2, tr, ts, vmem_limit)    # (n_s, R, 1) f32
    pooled = (jnp.sum(partials, axis=0)[:, 0] * (1.0 / float(HW))).reshape(B, C)

    # Tiny gate MLP in plain XLA, eval-mode BN folded into the Linears.
    n_hidden = sum(1 for k in params if k.startswith("fc") and k.endswith("_w"))
    h = pooled
    for i in range(n_hidden):
        w_eff, b_eff = _fold_bn(params[f"fc{i}_w"], params[f"fc{i}_b"], params[f"bn{i}"])
        h = jnp.maximum(h @ w_eff.T + b_eff, 0.0)
    gate = h @ params["last_w"].T + params["last_b"]         # (B, C) f32

    # Cast to the output dtype BEFORE broadcasting; channels on sublanes.
    gate_col = gate.astype(x.dtype).reshape(R, 1)

    if not expand:
        # If the consumer is elementwise in x (the real use is x * sigmoid(res)),
        # return the gate and let the consumer fuse the splat: halves HBM traffic.
        return gate_col.reshape(B, C, 1, 1)

    # Pass 2: lane-dense broadcast-write of the gate over the spatial axis.
    out2 = _broadcast_gate(gate_col, HW, tr, ts, vmem_limit)  # (R, HW)
    return out2.reshape(B, C, H, W)


# ---------------------------------------------------------------------------
# Pure-JAX reference (un-fused BN, exact PyTorch semantics) for checking.
# ---------------------------------------------------------------------------
def channel_attention_ref(x, params):
    B, C, H, W = x.shape
    pooled = jnp.mean(x.reshape(B, C, H * W).astype(jnp.float32), axis=-1)
    n_hidden = sum(1 for k in params if k.startswith("fc") and k.endswith("_w"))
    h = pooled
    for i in range(n_hidden):
        w, b = params[f"fc{i}_w"], params[f"fc{i}_b"]
        bn = params[f"bn{i}"]
        y = h @ w.T + b
        y = (y - bn[2]) / jnp.sqrt(bn[3] + BN_EPS) * bn[0] + bn[1]
        h = jnp.maximum(y, 0.0)
    res = h @ params["last_w"].T + params["last_b"]
    return jnp.broadcast_to(res[:, :, None, None], (B, C, H, W)).astype(x.dtype)


if __name__ == "__main__":
    key = jax.random.PRNGKey(0)
    k_x, k_p = jax.random.split(key)

    # Small shapes consistent with the module (channel must be >= reduction).
    B, C, H, W = 2, 64, 16, 16
    reduction, num_layers = 16, 3

    x = jax.random.normal(k_x, (B, C, H, W), jnp.float32)
    params = make_channel_attention_params(k_p, C, reduction, num_layers)

    out = jax.block_until_ready(channel_attention(x, params))

    ref = channel_attention_ref(x, params)
    assert out.shape == (B, C, H, W)
    assert jnp.allclose(out, ref, atol=1e-5, rtol=1e-5)

    print("KERNEL_OK")
</pallas_src>

<mosaic_0001>
module attributes {stable_mosaic.version = 11 : i64} {
  func.func @kernel(%arg0: i32, %arg1: i32, %arg2: memref<64x256xf32, #tpu.memory_space<vmem>>, %arg3: memref<1x64x1xf32, #tpu.memory_space<vmem>>) attributes {dimension_semantics = [#tpu.dimension_semantics<parallel>, #tpu.dimension_semantics<parallel>], iteration_bounds = array<i64: 2, 1>, scalar_prefetch = 0 : i64, scratch_operands = 0 : i64, tpu.core_type = #tpu.core_type<tc>, window_params = [{transform_indices = @transform_0, window_bounds = array<i64: 64, 256>}, {transform_indices = @transform_1, window_bounds = array<i64: 1, 64, 1>}]} {
    %c0 = arith.constant 0 : index
    %c0_0 = arith.constant 0 : index
    %0 = vector.load %arg2[%c0, %c0_0] : memref<64x256xf32, #tpu.memory_space<vmem>>, vector<64x256xf32>
    %cst = arith.constant dense<0.000000e+00> : vector<64xf32>
    %1 = vector.multi_reduction <add>, %0, %cst [1] : vector<64x256xf32> to vector<64xf32>
    %2 = vector.shape_cast %1 : vector<64xf32> to vector<64x1xf32>
    %3 = vector.shape_cast %2 : vector<64x1xf32> to vector<1x64x1xf32>
    %c0_1 = arith.constant 0 : index
    %c0_2 = arith.constant 0 : index
    %c0_3 = arith.constant 0 : index
    %4 = vector.load %arg3[%c0_1, %c0_2, %c0_3] : memref<1x64x1xf32, #tpu.memory_space<vmem>>, vector<1x64x1xf32>
    tpu.vector_store %arg3[%c0_1, %c0_2, %c0_3], %3 {strides = array<i32>} : memref<1x64x1xf32, #tpu.memory_space<vmem>>, vector<1x64x1xf32>,
    return
  }
  func.func @transform_0(%arg0: i32, %arg1: i32) -> (i32, i32) {
    %c0_i32 = arith.constant 0 : i32
    return %arg0, %arg1 : i32, i32
  }
  func.func @transform_1(%arg0: i32, %arg1: i32) -> (i32, i32, i32) {
    %c0_i32 = arith.constant 0 : i32
    %c0_i32_0 = arith.constant 0 : i32
    return %arg1, %arg0, %c0_i32 : i32, i32, i32
  }
}

</mosaic_0001>

<llo_original>
// kernel: tpu_custom_call.1
$region0: #{tpu_custom_call.1}
  #allocation0 [shape = 'u32[]', space=smem, size = 0x4, offset = 0x4, fixed_abs, tag = 'smem constant byte address 0x4 - core index']
  #allocation1 [shape = 'u32[144,128]{1,0:T(1,128)}', space=vmem, size = 0x12000, scoped, tag = 'internal scratch']
  %s0 = inlined_call_operand.hbm [shape: f32[128,256], index: 0, kind: input, shape index: {}]
  %s1 = inlined_call_operand.vmem [shape: f32[1,128,1], index: 1, kind: output, shape index: {}]
  %s2 = sld [smem:[#allocation0]]
  $region41: #{tpu_custom_call.1} parent=0
    _
  %s4 = ssub.s32 1, %s2
  %s5 = scalar_select 0, %s4, %s2
  $region1: #{tpu_custom_call.1} parent=0
    #allocation2 [shape = 'u8[131072]{0}', space=vmem, size = 0x20000, scoped, tag = 'input window, operand 0']
    #allocation3 [shape = 's32[2]{0}', space=sflag, size = 0x8, scoped, tag = 'scoped memory for tpu_custom_call.1']
    %6 = vsyncpa [#allocation3], 0
    %s7 = scalar_lea.sflag [#allocation3], 1
    %8 = vsyncpa %s7, 0
    loop: start=0, step=1, limit=4
    $region2: #{tpu_custom_call.1} parent=1 // loop_pre_header
      _
    $region3: #{tpu_custom_call.1} parent=1 // loop_header
      %s10 = sphi 0, %s14
      %p11 = scmp.ge.s32.totalorder %s10, 4
      %s17 = sphi 0, %s29
      %s18 = sphi 0, %s25
      %s19 = sphi 0, %s17
      %s20 = sphi 0, %s18
      %s21 = sphi 0, %s19
      %s22 = sphi 0, %s20
      %s34 = sphi 0, %s36
      %s37 = sphi 0, %s34
      %s38 = sphi 0, %s37
      %s54 = sphi 0, %s38
      %s62 = sphi 0, %s64
      %s65 = sphi 0, %s62
      %s66 = sphi 0, %s65
      %s82 = sphi 0, %s66
    $region4: #{tpu_custom_call.1} parent=1 // loop_header_branch
      %13 = sbr.rel (%p11) target = $region8
    $region5: #{tpu_custom_call.1} parent=1 // loop_body
      %s15 = ssub.s32 %s10, 1
      %s16 = ssub.s32 %s10, 2
      %s23 = sadd.s32 1, %s18
      %p24 = scmp.ge.s32.totalorder %s23, 1
      %s25 = scalar_select %p24, 0, %s23
      %s26 = sadd.s32 1, %s17
      %s27 = scalar_select %p24, %s26, %s17
      %p28 = scmp.ge.s32.totalorder %s27, 2
      %s29 = scalar_select %p28, 0, %s27
      %s30 = ssub.s32 %s17, %s29
      %s31 = ssub.s32 %s18, %s25
      %s32 = sor.u32 %s30, %s31
      %p33 = scmp.eq.s32.totalorder %s32, 0
      %s35 = sadd.s32 %s34, 1
      %s36 = scalar_select %p33, %s34, %s35
      %p39 = pneg %p33
      %p40 = scmp.eq.s32.totalorder %s10, 1
      %p41 = por %p39, %p40
      %p42 = scmp.ne.s32.totalorder %s34, %s37
      %p43 = scmp.eq.s32.totalorder %s10, 0
      %p44 = por %p42, %p43
      %p45 = scmp.ne.s32.totalorder %s34, %s37
      %p46 = scmp.eq.s32.totalorder %s15, 1
      %p47 = por %p45, %p46
      %p48 = scmp.ne.s32.totalorder %s37, %s38
      %p49 = scmp.eq.s32.totalorder %s15, 0
      %p50 = por %p48, %p49
      %p51 = scmp.ne.s32.totalorder %s37, %s38
      %p52 = scmp.eq.s32.totalorder %s16, 1
      %p53 = por %p51, %p52
      %p55 = scmp.ne.s32.totalorder %s38, %s54
      %p56 = scmp.eq.s32.totalorder %s16, 0
      %p57 = por %p55, %p56
      %s58 = ssub.s32 %s18, %s25
      %s59 = ssub.s32 %s17, %s29
      %s60 = sor.u32 %s58, %s59
      %p61 = scmp.eq.s32.totalorder %s60, 0
      %s63 = sadd.s32 %s62, 1
      %s64 = scalar_select %p61, %s62, %s63
      %p67 = pneg %p61
      %p68 = scmp.eq.s32.totalorder %s10, 1
      %p69 = por %p67, %p68
      %p70 = scmp.ne.s32.totalorder %s62, %s65
      %p71 = scmp.eq.s32.totalorder %s10, 0
      %p72 = por %p70, %p71
      %p73 = scmp.ne.s32.totalorder %s62, %s65
      %p74 = scmp.eq.s32.totalorder %s15, 1
      %p75 = por %p73, %p74
      %p76 = scmp.ne.s32.totalorder %s65, %s66
      %p77 = scmp.eq.s32.totalorder %s15, 0
      %p78 = por %p76, %p77
      %p79 = scmp.ne.s32.totalorder %s65, %s66
      %p80 = scmp.eq.s32.totalorder %s16, 1
      %p81 = por %p79, %p80
      %p83 = scmp.ne.s32.totalorder %s66, %s82
      %p84 = scmp.eq.s32.totalorder %s16, 0
      %p85 = por %p83, %p84
      %p86 = scmp.le.s32.totalorder 1, %s10
      %p87 = scmp.lt.s32.totalorder %s10, 3
      %p88 = pnand %p86, %p87
      %p89 = pneg %p88
      // Predicated region
      $region9: #{tpu_custom_call.1} parent=5 // pred_check
        _
      $region10: #{tpu_custom_call.1} parent=5 // pred_check_branch
        %91 = sbr.rel (%p88) target = $region12
      $region11: #{tpu_custom_call.1} parent=5 // pred_region
        %s92 = ssub.s32 %s10, 1
      $region12: #{tpu_custom_call.1} parent=5 // pred_fallthru
        _
      %p93 = scmp.lt.s32.totalorder %s10, 2
      // Predicated region
      $region13: #{tpu_custom_call.1} parent=5 // pred_check
        %p94 = pneg %p93
      $region14: #{tpu_custom_call.1} parent=5 // pred_check_branch
        %96 = sbr.rel (%p94) target = $region16
      $region15: #{tpu_custom_call.1} parent=5 // pred_region
        // Predicated region
        $region17: #{tpu_custom_call.1} parent=15 // pred_check
          %p97 = pneg %p44
        $region18: #{tpu_custom_call.1} parent=15 // pred_check_branch
          %99 = sbr.rel (%p97) target = $region20
        $region19: #{tpu_custom_call.1} parent=15 // pred_region
          %s100 = sand.u32 %s34, 1
          %s101 = scalar_lea.sflag [#allocation3], %s100
          %s102 = sand.u32 %s34, 1
          %s103 = smul.addr %s102, 128
          %s104 = scalar_lea.vmem [#allocation2], %s103
          %s105 = smul.u32 8, %s17
          %s106 = smul.u32 2, %s18
          %s108 = ssub.s32 2048, 2048
          %109 = vsyncadd %s101, %s108
          %s110 = smul.addr %s105, 2
          %s111 = sadd.s32 %s106, %s110
          %s112 = smul.addr %s111, 128
          %s113 = scalar_lea.hbm %s0, %s112
          %s114 = sshll.u32 %s104, 4
          %s115 = int_to_ptr.vmem [resolvable:$true] %s114
          %120 = dma.hbm_to_vmem [thread:$0]  %s113, 2048, %s115, %s101, 256, 256, 16
        $region20: #{tpu_custom_call.1} parent=15 // pred_fallthru
          _
      $region16: #{tpu_custom_call.1} parent=5 // pred_fallthru
        _
      %p121 = scmp.le.s32.totalorder 1, %s10
      %p122 = scmp.lt.s32.totalorder %s10, 3
      %p123 = pnand %p121, %p122
      %p124 = pneg %p123
      // Predicated region
      $region21: #{tpu_custom_call.1} parent=5 // pred_check
        _
      $region22: #{tpu_custom_call.1} parent=5 // pred_check_branch
        %126 = sbr.rel (%p123) target = $region24
      $region23: #{tpu_custom_call.1} parent=5 // pred_region
        %s127 = ssub.s32 %s10, 1
        %s128 = sand.u32 %s37, 1
        %s129 = scalar_lea.sflag [#allocation3], %s128
        %s130 = sand.u32 %s37, 1
        %s131 = smul.addr %s130, 128
        %s132 = scalar_lea.vmem [#allocation2], %s131
        // Predicated region
        $region25: #{tpu_custom_call.1} parent=23 // pred_check
          %p133 = pneg %p50
        $region26: #{tpu_custom_call.1} parent=23 // pred_check_branch
          %135 = sbr.rel (%p133) target = $region28
        $region27: #{tpu_custom_call.1} parent=23 // pred_region
          %136 = dma.done %s129, 2048
        $region28: #{tpu_custom_call.1} parent=23 // pred_fallthru
          _
        %s137 = sand.u32 %s37, 1
        %s138 = scalar_lea.sflag [#allocation3], %s137
        %s139 = sand.u32 %s37, 1
        %s140 = smul.addr %s139, 128
        %s141 = scalar_lea.vmem [#allocation2], %s140
        %p142 = pneg %p50
        %p143 = pneg %p47
        %p144 = pneg %p78
        %p145 = pneg %p75
        %s146 = smul.u32 8, %s19
        %p147 = scmp.lt.s32.totalorder %s20, 0
        %s148 = scalar_select %p147, %s20, 0
        %p149 = scmp.lt.s32.totalorder %s146, 15
        %s150 = scalar_select %p149, %s146, 15
        %s151 = smul.addr %s148, 16
        %s152 = sadd.s32 %s150, %s151
        %s153 = smul.addr %s152, 8
        %s154 = scalar_lea.vmem %s1, %s153
        %s155 = smul.u32 8, %s19
        %s156 = smul.u32 2, %s20
        %s157 = smul.u32 8, %s19
        %p158 = scmp.lt.s32.totalorder %s20, 0
        %s159 = scalar_select %p158, %s20, 0
        %p160 = scmp.lt.s32.totalorder %s157, 15
        %s161 = scalar_select %p160, %s157, 15
        %s162 = smul.addr %s159, 16
        %s163 = sadd.s32 %s161, %s162
        %s164 = smul.addr %s163, 8
        %s165 = scalar_lea.vmem %s1, %s164
        %s166 = smul.u32 8, %s19
        %v167 = vld [vmem:[%s132] sm:$0xff]
        %v168 = vld [vmem:[%s132 + $0x8] sm:$0xff]
        %v169 = vld [vmem:[%s132 + $0x10] sm:$0xff]
        %v170 = vld [vmem:[%s132 + $0x18] sm:$0xff]
        %v171 = vld [vmem:[%s132 + $0x20] sm:$0xff]
        %v172 = vld [vmem:[%s132 + $0x28] sm:$0xff]
        %v173 = vld [vmem:[%s132 + $0x30] sm:$0xff]
        %v174 = vld [vmem:[%s132 + $0x38] sm:$0xff]
        %v175 = vld [vmem:[%s132 + $0x40] sm:$0xff]
        %v176 = vld [vmem:[%s132 + $0x48] sm:$0xff]
        %v177 = vld [vmem:[%s132 + $0x50] sm:$0xff]
        %v178 = vld [vmem:[%s132 + $0x58] sm:$0xff]
        %v179 = vld [vmem:[%s132 + $0x60] sm:$0xff]
        %v180 = vld [vmem:[%s132 + $0x68] sm:$0xff]
        %v181 = vld [vmem:[%s132 + $0x70] sm:$0xff]
        %v182 = vld [vmem:[%s132 + $0x78] sm:$0xff]
        %v183 = vadd.f32 %v167, %v168
        %184 = vadd.xlane.f32.xlu0 %v183
        %v185 = vpop.xlane.xlu0 %184
        %v186 = vadd.f32 %v169, %v170
        %187 = vadd.xlane.f32.xlu0 %v186
        %v188 = vpop.xlane.xlu0 %187
        %v189 = vadd.f32 %v171, %v172
        %190 = vadd.xlane.f32.xlu0 %v189
        %v191 = vpop.xlane.xlu0 %190
        %v192 = vadd.f32 %v173, %v174
        %193 = vadd.xlane.f32.xlu0 %v192
        %v194 = vpop.xlane.xlu0 %193
        %v195 = vadd.f32 %v175, %v176
        %196 = vadd.xlane.f32.xlu0 %v195
        %v197 = vpop.xlane.xlu0 %196
        %v198 = vadd.f32 %v177, %v178
        %199 = vadd.xlane.f32.xlu0 %v198
        %v200 = vpop.xlane.xlu0 %199
        %v201 = vadd.f32 %v179, %v180
        %202 = vadd.xlane.f32.xlu0 %v201
        %v203 = vpop.xlane.xlu0 %202
        %v204 = vadd.f32 %v181, %v182
        %205 = vadd.xlane.f32.xlu0 %v204
        %v206 = vpop.xlane.xlu0 %205
        %vm207 = vcmask 7168
        %208 = vst.msk [vmem:[%s165] sm:$0xff] %vm207, %v185
        %209 = vst.msk [vmem:[%s165 + $0x8] sm:$0xff] %vm207, %v188
        %210 = vst.msk [vmem:[%s165 + $0x10] sm:$0xff] %vm207, %v191
        %211 = vst.msk [vmem:[%s165 + $0x18] sm:$0xff] %vm207, %v194
        %212 = vst.msk [vmem:[%s165 + $0x20] sm:$0xff] %vm207, %v197
        %213 = vst.msk [vmem:[%s165 + $0x28] sm:$0xff] %vm207, %v200
        %214 = vst.msk [vmem:[%s165 + $0x30] sm:$0xff] %vm207, %v203
        %215 = vst.msk [vmem:[%s165 + $0x38] sm:$0xff] %vm207, %v206
        %s216 = smul.u32 8, %s19
        %p217 = scmp.lt.s32.totalorder %s20, 0
        %s218 = scalar_select %p217, %s20, 0
        %p219 = scmp.lt.s32.totalorder %s216, 15
        %s220 = scalar_select %p219, %s216, 15
        %s221 = smul.addr %s218, 16
        %s222 = sadd.s32 %s220, %s221
        %s223 = smul.addr %s222, 8
        %s224 = scalar_lea.vmem %s1, %s223
        // Predicated region
        $region29: #{tpu_custom_call.1} parent=23 // pred_check
          %p225 = pneg %p75
        $region30: #{tpu_custom_call.1} parent=23 // pred_check_branch
          %227 = sbr.rel (%p225) target = $region32
        $region31: #{tpu_custom_call.1} parent=23 // pred_region
          %s228 = smul.u32 8, %s19
        $region32: #{tpu_custom_call.1} parent=23 // pred_fallthru
          _
      $region24: #{tpu_custom_call.1} parent=5 // pred_fallthru
        _
      %p229 = scmp.le.s32.totalorder 2, %s10
      // Predicated region
      $region33: #{tpu_custom_call.1} parent=5 // pred_check
        %p230 = pneg %p229
      $region34: #{tpu_custom_call.1} parent=5 // pred_check_branch
        %232 = sbr.rel (%p230) target = $region36
      $region35: #{tpu_custom_call.1} parent=5 // pred_region
        %s233 = ssub.s32 %s10, 2
        // Predicated region
        $region37: #{tpu_custom_call.1} parent=35 // pred_check
          %p234 = pneg %p81
        $region38: #{tpu_custom_call.1} parent=35 // pred_check_branch
          %236 = sbr.rel (%p234) target = $region40
        $region39: #{tpu_custom_call.1} parent=35 // pred_region
          %s237 = smul.u32 8, %s21
          %p238 = scmp.lt.s32.totalorder %s22, 0
          %s239 = scalar_select %p238, %s22, 0
          %p240 = scmp.lt.s32.totalorder %s237, 15
          %s241 = scalar_select %p240, %s237, 15
          %s242 = smul.addr %s239, 16
          %s243 = sadd.s32 %s241, %s242
          %s244 = smul.addr %s243, 8
          %s245 = scalar_lea.vmem %s1, %s244
        $region40: #{tpu_custom_call.1} parent=35 // pred_fallthru
          _
      $region36: #{tpu_custom_call.1} parent=5 // pred_fallthru
        _
    $region6: #{tpu_custom_call.1} parent=1 // loop_footer
      %s14 = sadd.s32 1, %s10
    $region7: #{tpu_custom_call.1} parent=1 // loop_footer_branch
      %9 = sbr.rel target = $region3
    $region8: #{tpu_custom_call.1} parent=1 // loop_exit
      _
    %246 = vsyncpa [#allocation3], 1
    %s247 = scalar_lea.sflag [#allocation3], 1
    %248 = vsyncpa %s247, 1

</llo_original>
